<compile_context>
chip_gen: v6e
topology: v6e:2x2x1
jax: 0.10.0
libtpu: 0.0.40
codegen_flags: <defaults>
</compile_context>

<pallas_src>
import functools

import jax
import jax.numpy as jnp
from jax import lax
from jax.experimental import pallas as pl
from jax.experimental.pallas import tpu as pltpu


def _mha_kernel(q_ref, k_ref, v_ref,
                wq_ref, bq_ref, wk_ref, bk_ref, wv_ref, bv_ref,
                wo_ref, bo_ref,
                o_ref,
                attn_sc,
                *, batch, sq, sk):
    # Activations arrive flattened: (B*Sq, Din) / (B*Sk, Din) — sublane-dense 2-D blocks.
    q = q_ref[...]
    k = k_ref[...]
    v = v_ref[...]

    # Batched projections (one MXU matmul each over all batch elements).
    # Wq/bq already carry the 1/sqrt(Dk) attention scale (folded at prep time).
    Q = jnp.dot(q, wq_ref[...], preferred_element_type=jnp.float32) + bq_ref[...]   # (B*Sq, Dk)
    K = jnp.dot(k, wk_ref[...], preferred_element_type=jnp.float32) + bk_ref[...]   # (B*Sk, Dk)
    V = jnp.dot(v, wv_ref[...], preferred_element_type=jnp.float32) + bv_ref[...]   # (B*Sk, Dv)

    # Scaled dot-product attention, per batch element (B is tiny -> static unroll).
    for b in range(batch):
        Qb = Q[b * sq:(b + 1) * sq, :]                                               # (Sq, Dk)
        Kb = K[b * sk:(b + 1) * sk, :]                                               # (Sk, Dk)
        Vb = V[b * sk:(b + 1) * sk, :]                                               # (Sk, Dv)

        # Contract on the last dim of both operands — no materialized K transpose.
        logits = lax.dot_general(Qb, Kb, (((1,), (1,)), ((), ())),
                                 preferred_element_type=jnp.float32)                 # (Sq, Sk)
        m = jnp.max(logits, axis=-1, keepdims=True)
        p = jnp.exp(logits - m)
        sm = p * pl.reciprocal(jnp.sum(p, axis=-1, keepdims=True), approx=True)
        attn_sc[b * sq:(b + 1) * sq, :] = jnp.dot(sm, Vb,
                                                  preferred_element_type=jnp.float32)

    # Final projection, batched over all rows.  wo_ref is the head-summed Wo
    # (Dv, Din): identical heads concatenated then projected == attn @ sum(Wo blocks).
    out = jnp.dot(attn_sc[...], wo_ref[...], preferred_element_type=jnp.float32) + bo_ref[...]
    o_ref[...] = out.astype(o_ref.dtype)


def prepare_params(params, *, num_heads):
    """One-time parameter prep (hoisted out of the per-call path).

    Transposes PyTorch-style (out, in) weights to (in, out), reshapes biases to
    (1, out), folds the 1/sqrt(key_dim) attention scale into the query
    projection, and sums the per-head row-blocks of the output projection
    (valid because every head in the reference module is identical).
    """
    key_dim = params["wq"].shape[0]
    value_dim = params["wv"].shape[0]
    input_dim = params["wq"].shape[1]
    inv_scale = 1.0 / (key_dim ** 0.5)

    wo_t = params["wo"].T                                  # (H*Dv, Din)
    wo_sum = wo_t.reshape(num_heads, value_dim, input_dim).sum(axis=0)   # (Dv, Din)

    return {
        "wq": params["wq"].T * inv_scale,                  # (Din, Dk), scale folded in
        "bq": params["bq"].reshape(1, -1) * inv_scale,     # (1, Dk)
        "wk": params["wk"].T,                              # (Din, Dk)
        "bk": params["bk"].reshape(1, -1),                 # (1, Dk)
        "wv": params["wv"].T,                              # (Din, Dv)
        "bv": params["bv"].reshape(1, -1),                 # (1, Dv)
        "wo": wo_sum,                                      # (Dv, Din)
        "bo": params["bo"].reshape(1, -1),                 # (1, Din)
    }


def multi_head_attention(query, key, value, prepped):
    """query/key/value: (B, S, input_dim) f32. prepped = prepare_params(...).

    Returns (B, Sq, input_dim).
    """
    B, Sq, Din = query.shape
    _, Sk, _ = key.shape
    Dk = prepped["wq"].shape[1]
    Dv = prepped["wv"].shape[1]

    # Flatten batch into the sublane dimension: 2-D, sublane-dense blocks.
    q2 = query.reshape(B * Sq, Din)
    k2 = key.reshape(B * Sk, Din)
    v2 = value.reshape(B * Sk, Din)

    full = lambda shape: pl.BlockSpec(shape, lambda i: tuple(0 for _ in shape))

    kernel = functools.partial(_mha_kernel, batch=B, sq=Sq, sk=Sk)

    out2 = pl.pallas_call(
        kernel,
        out_shape=jax.ShapeDtypeStruct((B * Sq, Din), query.dtype),
        grid_spec=pltpu.PrefetchScalarGridSpec(
            num_scalar_prefetch=0,
            grid=(1,),                                    # whole problem in one step
            in_specs=[
                full((B * Sq, Din)),                      # query  (flattened)
                full((B * Sk, Din)),                      # key
                full((B * Sk, Din)),                      # value
                full((Din, Dk)), full((1, Dk)),           # Wq (scaled), bq (scaled)
                full((Din, Dk)), full((1, Dk)),           # Wk, bk
                full((Din, Dv)), full((1, Dv)),           # Wv, bv
                full((Dv, Din)), full((1, Din)),          # Wo (head-summed), bo
            ],
            out_specs=full((B * Sq, Din)),
            scratch_shapes=[pltpu.VMEM((B * Sq, Dv), jnp.float32)],
        ),
        compiler_params=pltpu.CompilerParams(
            dimension_semantics=("arbitrary",)),
    )(q2, k2, v2,
      prepped["wq"], prepped["bq"],
      prepped["wk"], prepped["bk"],
      prepped["wv"], prepped["bv"],
      prepped["wo"], prepped["bo"])

    return out2.reshape(B, Sq, Din)


def _reference(query, key, value, params, *, num_heads):
    """Pure-JAX reference matching the PyTorch forward exactly."""
    def lin(x, w, b):
        return x @ w.T + b
    Q = lin(query, params["wq"], params["bq"])
    K = lin(key, params["wk"], params["bk"])
    V = lin(value, params["wv"], params["bv"])
    logits = jnp.einsum("bqd,bkd->bqk", Q, K) / (Q.shape[-1] ** 0.5)
    sm = jax.nn.softmax(logits, axis=-1)
    attn = jnp.einsum("bqk,bkd->bqd", sm, V)
    cat = jnp.concatenate([attn] * num_heads, axis=-1)
    return lin(cat, params["wo"], params["bo"])


if __name__ == "__main__":
    num_heads = 4
    input_dim = 32
    key_dim = 16
    value_dim = 16
    B, Sq, Sk = 2, 8, 8

    root = jax.random.PRNGKey(0)
    keys = jax.random.split(root, 12)

    # Deterministic synthetic parameters (PyTorch nn.Linear weight shape: (out, in)).
    params = {
        "wq": jax.random.normal(keys[0], (key_dim, input_dim), jnp.float32) * 0.1,
        "bq": jax.random.normal(keys[1], (key_dim,), jnp.float32) * 0.1,
        "wk": jax.random.normal(keys[2], (key_dim, input_dim), jnp.float32) * 0.1,
        "bk": jax.random.normal(keys[3], (key_dim,), jnp.float32) * 0.1,
        "wv": jax.random.normal(keys[4], (value_dim, input_dim), jnp.float32) * 0.1,
        "bv": jax.random.normal(keys[5], (value_dim,), jnp.float32) * 0.1,
        "wo": jax.random.normal(keys[6], (input_dim, num_heads * value_dim), jnp.float32) * 0.1,
        "bo": jax.random.normal(keys[7], (input_dim,), jnp.float32) * 0.1,
    }

    query = jax.random.normal(keys[8], (B, Sq, input_dim), jnp.float32)
    key = jax.random.normal(keys[9], (B, Sk, input_dim), jnp.float32)
    value = jax.random.normal(keys[10], (B, Sk, input_dim), jnp.float32)

    # One-time parameter preparation (transpose / scale-fold / head-sum).
    prepped = prepare_params(params, num_heads=num_heads)

    out = multi_head_attention(query, key, value, prepped)
    out = jax.block_until_ready(out)

    ref = _reference(query, key, value, params, num_heads=num_heads)
    assert out.shape == (B, Sq, input_dim)
    # Slightly looser tolerance: approx-reciprocal softmax denom (EUP vrcp).
    assert jnp.allclose(out, ref, atol=1e-3, rtol=1e-3), "mismatch vs reference"

    print("KERNEL_OK")
</pallas_src>

<mosaic_0001>
module attributes {stable_mosaic.version = 11 : i64} {
  func.func @_mha_kernel(%arg0: i32, %arg1: memref<16x32xf32, #tpu.memory_space<vmem>>, %arg2: memref<16x32xf32, #tpu.memory_space<vmem>>, %arg3: memref<16x32xf32, #tpu.memory_space<vmem>>, %arg4: memref<32x16xf32, #tpu.memory_space<vmem>>, %arg5: memref<1x16xf32, #tpu.memory_space<vmem>>, %arg6: memref<32x16xf32, #tpu.memory_space<vmem>>, %arg7: memref<1x16xf32, #tpu.memory_space<vmem>>, %arg8: memref<32x16xf32, #tpu.memory_space<vmem>>, %arg9: memref<1x16xf32, #tpu.memory_space<vmem>>, %arg10: memref<16x32xf32, #tpu.memory_space<vmem>>, %arg11: memref<1x32xf32, #tpu.memory_space<vmem>>, %arg12: memref<16x32xf32, #tpu.memory_space<vmem>>, %arg13: memref<16x16xf32, #tpu.memory_space<vmem>>) attributes {dimension_semantics = [#tpu.dimension_semantics<arbitrary>], iteration_bounds = array<i64: 1>, scalar_prefetch = 0 : i64, scratch_operands = 1 : i64, tpu.core_type = #tpu.core_type<tc>, window_params = [{pipeline_mode = #tpu.pipeline_mode<synchronous>, transform_indices = @transform_0, window_bounds = array<i64: 16, 32>}, {pipeline_mode = #tpu.pipeline_mode<synchronous>, transform_indices = @transform_1, window_bounds = array<i64: 16, 32>}, {pipeline_mode = #tpu.pipeline_mode<synchronous>, transform_indices = @transform_2, window_bounds = array<i64: 16, 32>}, {pipeline_mode = #tpu.pipeline_mode<synchronous>, transform_indices = @transform_3, window_bounds = array<i64: 32, 16>}, {pipeline_mode = #tpu.pipeline_mode<synchronous>, transform_indices = @transform_4, window_bounds = array<i64: 1, 16>}, {pipeline_mode = #tpu.pipeline_mode<synchronous>, transform_indices = @transform_5, window_bounds = array<i64: 32, 16>}, {pipeline_mode = #tpu.pipeline_mode<synchronous>, transform_indices = @transform_6, window_bounds = array<i64: 1, 16>}, {pipeline_mode = #tpu.pipeline_mode<synchronous>, transform_indices = @transform_7, window_bounds = array<i64: 32, 16>}, {pipeline_mode = #tpu.pipeline_mode<synchronous>, transform_indices = @transform_8, window_bounds = array<i64: 1, 16>}, {pipeline_mode = #tpu.pipeline_mode<synchronous>, transform_indices = @transform_9, window_bounds = array<i64: 16, 32>}, {pipeline_mode = #tpu.pipeline_mode<synchronous>, transform_indices = @transform_10, window_bounds = array<i64: 1, 32>}, {pipeline_mode = #tpu.pipeline_mode<synchronous>, transform_indices = @transform_11, window_bounds = array<i64: 16, 32>}]} {
    %c0 = arith.constant 0 : index
    %c0_0 = arith.constant 0 : index
    %0 = vector.load %arg1[%c0, %c0_0] : memref<16x32xf32, #tpu.memory_space<vmem>>, vector<16x32xf32>
    %c0_1 = arith.constant 0 : index
    %c0_2 = arith.constant 0 : index
    %1 = vector.load %arg2[%c0_1, %c0_2] : memref<16x32xf32, #tpu.memory_space<vmem>>, vector<16x32xf32>
    %c0_3 = arith.constant 0 : index
    %c0_4 = arith.constant 0 : index
    %2 = vector.load %arg3[%c0_3, %c0_4] : memref<16x32xf32, #tpu.memory_space<vmem>>, vector<16x32xf32>
    %c0_5 = arith.constant 0 : index
    %c0_6 = arith.constant 0 : index
    %3 = vector.load %arg4[%c0_5, %c0_6] : memref<32x16xf32, #tpu.memory_space<vmem>>, vector<32x16xf32>
    %cst = arith.constant dense<0.000000e+00> : vector<16x16xf32>
    %4 = tpu.matmul %0, %3, %cst {dimension_numbers = #tpu.dot_dimension_numbers<[1], [0], [0], [1], [0, 0, 1, 1], [], []>} : vector<16x32xf32>, vector<32x16xf32>, vector<16x16xf32> -> vector<16x16xf32>
    %c0_7 = arith.constant 0 : index
    %c0_8 = arith.constant 0 : index
    %5 = vector.load %arg5[%c0_7, %c0_8] : memref<1x16xf32, #tpu.memory_space<vmem>>, vector<1x16xf32>
    %6 = vector.broadcast %5 : vector<1x16xf32> to vector<16x16xf32>
    %7 = arith.addf %4, %6 : vector<16x16xf32>
    %c0_9 = arith.constant 0 : index
    %c0_10 = arith.constant 0 : index
    %8 = vector.load %arg6[%c0_9, %c0_10] : memref<32x16xf32, #tpu.memory_space<vmem>>, vector<32x16xf32>
    %cst_11 = arith.constant dense<0.000000e+00> : vector<16x16xf32>
    %9 = tpu.matmul %1, %8, %cst_11 {dimension_numbers = #tpu.dot_dimension_numbers<[1], [0], [0], [1], [0, 0, 1, 1], [], []>} : vector<16x32xf32>, vector<32x16xf32>, vector<16x16xf32> -> vector<16x16xf32>
    %c0_12 = arith.constant 0 : index
    %c0_13 = arith.constant 0 : index
    %10 = vector.load %arg7[%c0_12, %c0_13] : memref<1x16xf32, #tpu.memory_space<vmem>>, vector<1x16xf32>
    %11 = vector.broadcast %10 : vector<1x16xf32> to vector<16x16xf32>
    %12 = arith.addf %9, %11 : vector<16x16xf32>
    %c0_14 = arith.constant 0 : index
    %c0_15 = arith.constant 0 : index
    %13 = vector.load %arg8[%c0_14, %c0_15] : memref<32x16xf32, #tpu.memory_space<vmem>>, vector<32x16xf32>
    %cst_16 = arith.constant dense<0.000000e+00> : vector<16x16xf32>
    %14 = tpu.matmul %2, %13, %cst_16 {dimension_numbers = #tpu.dot_dimension_numbers<[1], [0], [0], [1], [0, 0, 1, 1], [], []>} : vector<16x32xf32>, vector<32x16xf32>, vector<16x16xf32> -> vector<16x16xf32>
    %c0_17 = arith.constant 0 : index
    %c0_18 = arith.constant 0 : index
    %15 = vector.load %arg9[%c0_17, %c0_18] : memref<1x16xf32, #tpu.memory_space<vmem>>, vector<1x16xf32>
    %16 = vector.broadcast %15 : vector<1x16xf32> to vector<16x16xf32>
    %17 = arith.addf %14, %16 : vector<16x16xf32>
    %18 = vector.extract_strided_slice %7 {offsets = [0, 0], sizes = [8, 16], strides = [1, 1]} : vector<16x16xf32> to vector<8x16xf32>
    %19 = vector.extract_strided_slice %12 {offsets = [0, 0], sizes = [8, 16], strides = [1, 1]} : vector<16x16xf32> to vector<8x16xf32>
    %20 = vector.extract_strided_slice %17 {offsets = [0, 0], sizes = [8, 16], strides = [1, 1]} : vector<16x16xf32> to vector<8x16xf32>
    %cst_19 = arith.constant dense<0.000000e+00> : vector<8x8xf32>
    %21 = tpu.matmul %18, %19, %cst_19 {dimension_numbers = #tpu.dot_dimension_numbers<[1], [1], [0], [0], [0, 0, 1, 0], [], []>} : vector<8x16xf32>, vector<8x16xf32>, vector<8x8xf32> -> vector<8x8xf32>
    %cst_20 = arith.constant dense<0xFF800000> : vector<8xf32>
    %22 = vector.multi_reduction <maximumf>, %21, %cst_20 [1] : vector<8x8xf32> to vector<8xf32>
    %23 = vector.shape_cast %22 : vector<8xf32> to vector<8x1xf32>
    %24 = vector.broadcast %23 : vector<8x1xf32> to vector<8x8xf32>
    %25 = arith.subf %21, %24 : vector<8x8xf32>
    %26 = math.exp %25 : vector<8x8xf32>
    %cst_21 = arith.constant dense<0.000000e+00> : vector<8xf32>
    %27 = vector.multi_reduction <add>, %26, %cst_21 [1] : vector<8x8xf32> to vector<8xf32>
    %28 = vector.shape_cast %27 : vector<8xf32> to vector<8x1xf32>
    %29 = tpu.reciprocal %28 {approx = true} : vector<8x1xf32> -> vector<8x1xf32>
    %30 = vector.broadcast %29 : vector<8x1xf32> to vector<8x8xf32>
    %31 = arith.mulf %26, %30 : vector<8x8xf32>
    %cst_22 = arith.constant dense<0.000000e+00> : vector<8x16xf32>
    %32 = tpu.matmul %31, %20, %cst_22 {dimension_numbers = #tpu.dot_dimension_numbers<[1], [0], [0], [1], [0, 0, 1, 1], [], []>} : vector<8x8xf32>, vector<8x16xf32>, vector<8x16xf32> -> vector<8x16xf32>
    %c0_23 = arith.constant 0 : index
    %c0_24 = arith.constant 0 : index
    %33 = vector.load %arg13[%c0_23, %c0_24] : memref<16x16xf32, #tpu.memory_space<vmem>>, vector<8x16xf32>
    tpu.vector_store %arg13[%c0_23, %c0_24], %32 {strides = array<i32>} : memref<16x16xf32, #tpu.memory_space<vmem>>, vector<8x16xf32>,
    %34 = vector.extract_strided_slice %7 {offsets = [8, 0], sizes = [8, 16], strides = [1, 1]} : vector<16x16xf32> to vector<8x16xf32>
    %35 = vector.extract_strided_slice %12 {offsets = [8, 0], sizes = [8, 16], strides = [1, 1]} : vector<16x16xf32> to vector<8x16xf32>
    %36 = vector.extract_strided_slice %17 {offsets = [8, 0], sizes = [8, 16], strides = [1, 1]} : vector<16x16xf32> to vector<8x16xf32>
    %cst_25 = arith.constant dense<0.000000e+00> : vector<8x8xf32>
    %37 = tpu.matmul %34, %35, %cst_25 {dimension_numbers = #tpu.dot_dimension_numbers<[1], [1], [0], [0], [0, 0, 1, 0], [], []>} : vector<8x16xf32>, vector<8x16xf32>, vector<8x8xf32> -> vector<8x8xf32>
    %cst_26 = arith.constant dense<0xFF800000> : vector<8xf32>
    %38 = vector.multi_reduction <maximumf>, %37, %cst_26 [1] : vector<8x8xf32> to vector<8xf32>
    %39 = vector.shape_cast %38 : vector<8xf32> to vector<8x1xf32>
    %40 = vector.broadcast %39 : vector<8x1xf32> to vector<8x8xf32>
    %41 = arith.subf %37, %40 : vector<8x8xf32>
    %42 = math.exp %41 : vector<8x8xf32>
    %cst_27 = arith.constant dense<0.000000e+00> : vector<8xf32>
    %43 = vector.multi_reduction <add>, %42, %cst_27 [1] : vector<8x8xf32> to vector<8xf32>
    %44 = vector.shape_cast %43 : vector<8xf32> to vector<8x1xf32>
    %45 = tpu.reciprocal %44 {approx = true} : vector<8x1xf32> -> vector<8x1xf32>
    %46 = vector.broadcast %45 : vector<8x1xf32> to vector<8x8xf32>
    %47 = arith.mulf %42, %46 : vector<8x8xf32>
    %cst_28 = arith.constant dense<0.000000e+00> : vector<8x16xf32>
    %48 = tpu.matmul %47, %36, %cst_28 {dimension_numbers = #tpu.dot_dimension_numbers<[1], [0], [0], [1], [0, 0, 1, 1], [], []>} : vector<8x8xf32>, vector<8x16xf32>, vector<8x16xf32> -> vector<8x16xf32>
    %c8 = arith.constant 8 : index
    %c0_29 = arith.constant 0 : index
    %49 = vector.load %arg13[%c8, %c0_29] : memref<16x16xf32, #tpu.memory_space<vmem>>, vector<8x16xf32>
    tpu.vector_store %arg13[%c8, %c0_29], %48 {strides = array<i32>} : memref<16x16xf32, #tpu.memory_space<vmem>>, vector<8x16xf32>,
    %c0_30 = arith.constant 0 : index
    %c0_31 = arith.constant 0 : index
    %50 = vector.load %arg13[%c0_30, %c0_31] : memref<16x16xf32, #tpu.memory_space<vmem>>, vector<16x16xf32>
    %c0_32 = arith.constant 0 : index
    %c0_33 = arith.constant 0 : index
    %51 = vector.load %arg10[%c0_32, %c0_33] : memref<16x32xf32, #tpu.memory_space<vmem>>, vector<16x32xf32>
    %cst_34 = arith.constant dense<0.000000e+00> : vector<16x32xf32>
    %52 = tpu.matmul %50, %51, %cst_34 {dimension_numbers = #tpu.dot_dimension_numbers<[1], [0], [0], [1], [0, 0, 1, 1], [], []>} : vector<16x16xf32>, vector<16x32xf32>, vector<16x32xf32> -> vector<16x32xf32>
    %c0_35 = arith.constant 0 : index
    %c0_36 = arith.constant 0 : index
    %53 = vector.load %arg11[%c0_35, %c0_36] : memref<1x32xf32, #tpu.memory_space<vmem>>, vector<1x32xf32>
    %54 = vector.broadcast %53 : vector<1x32xf32> to vector<16x32xf32>
    %55 = arith.addf %52, %54 : vector<16x32xf32>
    %c0_37 = arith.constant 0 : index
    %c0_38 = arith.constant 0 : index
    %56 = vector.load %arg12[%c0_37, %c0_38] : memref<16x32xf32, #tpu.memory_space<vmem>>, vector<16x32xf32>
    tpu.vector_store %arg12[%c0_37, %c0_38], %55 {strides = array<i32>} : memref<16x32xf32, #tpu.memory_space<vmem>>, vector<16x32xf32>,
    return
  }
  func.func @transform_0(%arg0: i32) -> (i32, i32) {
    %c0_i32 = arith.constant 0 : i32
    %c0_i32_0 = arith.constant 0 : i32
    %c0_i32_1 = arith.constant 0 : i32
    return %c0_i32, %c0_i32_0 : i32, i32
  }
  func.func @transform_1(%arg0: i32) -> (i32, i32) {
    %c0_i32 = arith.constant 0 : i32
    %c0_i32_0 = arith.constant 0 : i32
    %c0_i32_1 = arith.constant 0 : i32
    return %c0_i32, %c0_i32_0 : i32, i32
  }
  func.func @transform_2(%arg0: i32) -> (i32, i32) {
    %c0_i32 = arith.constant 0 : i32
    %c0_i32_0 = arith.constant 0 : i32
    %c0_i32_1 = arith.constant 0 : i32
    return %c0_i32, %c0_i32_0 : i32, i32
  }
  func.func @transform_3(%arg0: i32) -> (i32, i32) {
    %c0_i32 = arith.constant 0 : i32
    %c0_i32_0 = arith.constant 0 : i32
    %c0_i32_1 = arith.constant 0 : i32
    return %c0_i32, %c0_i32_0 : i32, i32
  }
  func.func @transform_4(%arg0: i32) -> (i32, i32) {
    %c0_i32 = arith.constant 0 : i32
    %c0_i32_0 = arith.constant 0 : i32
    %c0_i32_1 = arith.constant 0 : i32
    return %c0_i32, %c0_i32_0 : i32, i32
  }
  func.func @transform_5(%arg0: i32) -> (i32, i32) {
    %c0_i32 = arith.constant 0 : i32
    %c0_i32_0 = arith.constant 0 : i32
    %c0_i32_1 = arith.constant 0 : i32
    return %c0_i32, %c0_i32_0 : i32, i32
  }
  func.func @transform_6(%arg0: i32) -> (i32, i32) {
    %c0_i32 = arith.constant 0 : i32
    %c0_i32_0 = arith.constant 0 : i32
    %c0_i32_1 = arith.constant 0 : i32
    return %c0_i32, %c0_i32_0 : i32, i32
  }
  func.func @transform_7(%arg0: i32) -> (i32, i32) {
    %c0_i32 = arith.constant 0 : i32
    %c0_i32_0 = arith.constant 0 : i32
    %c0_i32_1 = arith.constant 0 : i32
    return %c0_i32, %c0_i32_0 : i32, i32
  }
  func.func @transform_8(%arg0: i32) -> (i32, i32) {
    %c0_i32 = arith.constant 0 : i32
    %c0_i32_0 = arith.constant 0 : i32
    %c0_i32_1 = arith.constant 0 : i32
    return %c0_i32, %c0_i32_0 : i32, i32
  }
  func.func @transform_9(%arg0: i32) -> (i32, i32) {
    %c0_i32 = arith.constant 0 : i32
    %c0_i32_0 = arith.constant 0 : i32
    %c0_i32_1 = arith.constant 0 : i32
    return %c0_i32, %c0_i32_0 : i32, i32
  }
  func.func @transform_10(%arg0: i32) -> (i32, i32) {
    %c0_i32 = arith.constant 0 : i32
    %c0_i32_0 = arith.constant 0 : i32
    %c0_i32_1 = arith.constant 0 : i32
    return %c0_i32, %c0_i32_0 : i32, i32
  }
  func.func @transform_11(%arg0: i32) -> (i32, i32) {
    %c0_i32 = arith.constant 0 : i32
    %c0_i32_0 = arith.constant 0 : i32
    %c0_i32_1 = arith.constant 0 : i32
    return %c0_i32, %c0_i32_0 : i32, i32
  }
}

</mosaic_0001>

<llo_original>
// kernel: tpu_custom_call.1
$region0: #{tpu_custom_call.1}
  #allocation0 [shape = 'u32[]', space=smem, size = 0x4, offset = 0x4, fixed_abs, tag = 'smem constant byte address 0x4 - core index']
  #allocation1 [shape = 'u32[144,128]{1,0:T(1,128)}', space=vmem, size = 0x12000, scoped, tag = 'internal scratch']
  #allocation2 [shape = 'f32[16,16]{1,0:T(8,128)}', space=vmem, size = 0x2000, scoped, tag = 'scratch operand']
  %s0 = inlined_call_operand.vmem [shape: f32[16,32], index: 0, kind: input, shape index: {}]
  %s1 = inlined_call_operand.vmem [shape: f32[16,32], index: 1, kind: input, shape index: {}]
  %s2 = inlined_call_operand.vmem [shape: f32[16,32], index: 2, kind: input, shape index: {}]
  %s3 = inlined_call_operand.vmem [shape: f32[32,16], index: 3, kind: input, shape index: {}]
  %s4 = inlined_call_operand.vmem [shape: f32[1,16], index: 4, kind: input, shape index: {}]
  %s5 = inlined_call_operand.vmem [shape: f32[32,16], index: 5, kind: input, shape index: {}]
  %s6 = inlined_call_operand.vmem [shape: f32[1,16], index: 6, kind: input, shape index: {}]
  %s7 = inlined_call_operand.vmem [shape: f32[32,16], index: 7, kind: input, shape index: {}]
  %s8 = inlined_call_operand.vmem [shape: f32[1,16], index: 8, kind: input, shape index: {}]
  %s9 = inlined_call_operand.vmem [shape: f32[16,32], index: 9, kind: input, shape index: {}]
  %s10 = inlined_call_operand.vmem [shape: f32[1,32], index: 10, kind: input, shape index: {}]
  %s11 = inlined_call_operand.hbm [shape: f32[16,32], index: 11, kind: output, shape index: {}]
  %s12 = sld [smem:[#allocation0]]
  $region54: #{tpu_custom_call.1} parent=0
    _
  %s14 = ssub.s32 1, %s12
  %s15 = scalar_select 0, %s14, %s12
  $region1: #{tpu_custom_call.1} parent=0
    #allocation3 [shape = 'u8[8192]{0}', space=vmem, size = 0x2000, scoped, tag = 'output window, operand 0, single buffered']
    #allocation4 [shape = 's32[1]{0}', space=sflag, size = 0x4, scoped, tag = 'scoped memory for tpu_custom_call.1']
    %16 = vsyncpa [#allocation4], 0
    // Predicated region
    $region2: #{tpu_custom_call.1} parent=1 // pred_check
      _
    $region3: #{tpu_custom_call.1} parent=1 // pred_check_branch
      %18 = sbr.rel (0) target = $region5
    $region4: #{tpu_custom_call.1} parent=1 // pred_region
      _
    $region5: #{tpu_custom_call.1} parent=1 // pred_fallthru
      _
    // Predicated region
    $region6: #{tpu_custom_call.1} parent=1 // pred_check
      _
    $region7: #{tpu_custom_call.1} parent=1 // pred_check_branch
      %20 = sbr.rel (0) target = $region9
    $region8: #{tpu_custom_call.1} parent=1 // pred_region
      _
    $region9: #{tpu_custom_call.1} parent=1 // pred_fallthru
      _
    // Predicated region
    $region10: #{tpu_custom_call.1} parent=1 // pred_check
      _
    $region11: #{tpu_custom_call.1} parent=1 // pred_check_branch
      %22 = sbr.rel (0) target = $region13
    $region12: #{tpu_custom_call.1} parent=1 // pred_region
      _
    $region13: #{tpu_custom_call.1} parent=1 // pred_fallthru
      _
    // Predicated region
    $region14: #{tpu_custom_call.1} parent=1 // pred_check
      _
    $region15: #{tpu_custom_call.1} parent=1 // pred_check_branch
      %24 = sbr.rel (0) target = $region17
    $region16: #{tpu_custom_call.1} parent=1 // pred_region
      _
    $region17: #{tpu_custom_call.1} parent=1 // pred_fallthru
      _
    // Predicated region
    $region18: #{tpu_custom_call.1} parent=1 // pred_check
      _
    $region19: #{tpu_custom_call.1} parent=1 // pred_check_branch
      %26 = sbr.rel (0) target = $region21
    $region20: #{tpu_custom_call.1} parent=1 // pred_region
      _
    $region21: #{tpu_custom_call.1} parent=1 // pred_fallthru
      _
    // Predicated region
    $region22: #{tpu_custom_call.1} parent=1 // pred_check
      _
    $region23: #{tpu_custom_call.1} parent=1 // pred_check_branch
      %28 = sbr.rel (0) target = $region25
    $region24: #{tpu_custom_call.1} parent=1 // pred_region
      _
    $region25: #{tpu_custom_call.1} parent=1 // pred_fallthru
      _
    // Predicated region
    $region26: #{tpu_custom_call.1} parent=1 // pred_check
      _
    $region27: #{tpu_custom_call.1} parent=1 // pred_check_branch
      %30 = sbr.rel (0) target = $region29
    $region28: #{tpu_custom_call.1} parent=1 // pred_region
      _
    $region29: #{tpu_custom_call.1} parent=1 // pred_fallthru
      _
    // Predicated region
    $region30: #{tpu_custom_call.1} parent=1 // pred_check
      _
    $region31: #{tpu_custom_call.1} parent=1 // pred_check_branch
      %32 = sbr.rel (0) target = $region33
    $region32: #{tpu_custom_call.1} parent=1 // pred_region
      _
    $region33: #{tpu_custom_call.1} parent=1 // pred_fallthru
      _
    // Predicated region
    $region34: #{tpu_custom_call.1} parent=1 // pred_check
      _
    $region35: #{tpu_custom_call.1} parent=1 // pred_check_branch
      %34 = sbr.rel (0) target = $region37
    $region36: #{tpu_custom_call.1} parent=1 // pred_region
      _
    $region37: #{tpu_custom_call.1} parent=1 // pred_fallthru
      _
    // Predicated region
    $region38: #{tpu_custom_call.1} parent=1 // pred_check
      _
    $region39: #{tpu_custom_call.1} parent=1 // pred_check_branch
      %36 = sbr.rel (0) target = $region41
    $region40: #{tpu_custom_call.1} parent=1 // pred_region
      _
    $region41: #{tpu_custom_call.1} parent=1 // pred_fallthru
      _
    // Predicated region
    $region42: #{tpu_custom_call.1} parent=1 // pred_check
      _
    $region43: #{tpu_custom_call.1} parent=1 // pred_check_branch
      %38 = sbr.rel (0) target = $region45
    $region44: #{tpu_custom_call.1} parent=1 // pred_region
      _
    $region45: #{tpu_custom_call.1} parent=1 // pred_fallthru
      _
    %v39 = vld [vmem:[%s0] sm:$0xff]
    %v40 = vld [vmem:[%s0 + $0x8] sm:$0xff]
    %v41 = vld [vmem:[%s1] sm:$0xff]
    %v42 = vld [vmem:[%s1 + $0x8] sm:$0xff]
    %v43 = vld [vmem:[%s2] sm:$0xff]
    %v44 = vld [vmem:[%s2 + $0x8] sm:$0xff]
    %v45 = vld [vmem:[%s3] sm:$0xff]
    %v46 = vld [vmem:[%s3 + $0x8] sm:$0xff]
    %v47 = vld [vmem:[%s3 + $0x10] sm:$0xff]
    %v48 = vld [vmem:[%s3 + $0x18] sm:$0xff]
    %v49 = vld [vmem:[%s4] sm:$0x1]
    %v51 = vlaneseq
    %v52 = vshrl.u32 %v51, 7
    %v53 = vsub.s32 0, %v52
    %v54 = vrot.slane %v49, %v53
    %vm56 = vcmask 261120
    %v58 = vsel %vm56, %v39, 0
    %v61 = vsel %vm56, %v40, 0
    %63 = vmatprep.subr.mxu0 0.0
    %64 = vmatpush1.msra.mxu0 0.0
    %65 = vmatprep.subr.mxu0 0.0
    %66 = vmatpush1.msra.mxu0 0.0
    %67 = vmatprep.subr.mxu0 0.0
    %68 = vmatpush1.msra.mxu0 0.0
    %69 = vmatprep.subr.mxu0 0.0
    %70 = vmatpush1.msra.mxu0 0.0
    %71 = vmatprep.subr.mxu0 0.0
    %72 = vmatpush1.msra.mxu0 0.0
    %73 = vmatprep.subr.mxu0 0.0
    %74 = vmatpush1.msra.mxu0 0.0
    %75 = vmatprep.subr.mxu0 0.0
    %76 = vmatpush1.msra.mxu0 0.0
    %77 = vmatprep.subr.mxu0 0.0
    %78 = vmatpush1.msra.mxu0 0.0
    %79 = vmatprep.subr.mxu0 0.0
    %80 = vmatpush1.msra.mxu0 0.0
    %81 = vmatprep.subr.mxu0 0.0
    %82 = vmatpush1.msra.mxu0 0.0
    %83 = vmatprep.subr.mxu0 0.0
    %84 = vmatpush1.msra.mxu0 0.0
    %85 = vmatprep.subr.mxu0 0.0
    %86 = vmatpush1.msra.mxu0 0.0
    %87 = vmatprep.subr.mxu0 0.0
    %88 = vmatpush1.msra.mxu0 %v48
    %89 = vmatprep.subr.mxu0 0.0
    %90 = vmatpush1.msra.mxu0 %v47
    %91 = vmatprep.subr.mxu0 0.0
    %92 = vmatpush1.msra.mxu0 %v46
    %93 = vmatprep.subr.mxu0 0.0
    %94 = vmatpush1.msra.mxu0 %v45
    %95 = vmatprep.subr.mxu0 0.0
    %96 = vmatpush2.msra.mxu0 0.0
    %97 = vmatprep.subr.mxu0 0.0
    %98 = vmatpush2.msra.mxu0 0.0
    %99 = vmatprep.subr.mxu0 0.0
    %100 = vmatpush2.msra.mxu0 0.0
    %101 = vmatprep.subr.mxu0 0.0
    %102 = vmatpush2.msra.mxu0 0.0
    %103 = vmatprep.subr.mxu0 0.0
    %104 = vmatpush2.msra.mxu0 0.0
    %105 = vmatprep.subr.mxu0 0.0
    %106 = vmatpush2.msra.mxu0 0.0
    %107 = vmatprep.subr.mxu0 0.0
    %108 = vmatpush2.msra.mxu0 0.0
    %109 = vmatprep.subr.mxu0 0.0
    %110 = vmatpush2.msra.mxu0 0.0
    %111 = vmatprep.subr.mxu0 0.0
    %112 = vmatpush2.msra.mxu0 0.0
    %113 = vmatprep.subr.mxu0 0.0
    %114 = vmatpush2.msra.mxu0 0.0
    %115 = vmatprep.subr.mxu0 0.0
    %116 = vmatpush2.msra.mxu0 0.0
    %117 = vmatprep.subr.mxu0 0.0
    %118 = vmatpush2.msra.mxu0 0.0
    %119 = vmatprep.subr.mxu0 0.0
    %120 = vmatpush2.msra.mxu0 0.0
    %121 = vmatprep.subr.mxu0 0.0
    %122 = vmatpush2.msra.mxu0 0.0
    %123 = vmatprep.subr.mxu0 0.0
    %124 = vmatpush2.msra.mxu0 0.0
    %125 = vmatprep.subr.mxu0 0.0
    %126 = vmatpush2.msra.mxu0 0.0
    %127 = vmatprep.mubr.f32.mxu0 0.0
    %128 = vmatmul.mubr.f32.gmra.mxu0 %v58
    %v129 = vpop.f32.mrf.mxu0
    %v130 = vadd.f32 %v54, %v129
    %v131 = vpop.f32.mrf.mxu0
    %132 = vmatprep.mubr.f32.mxu0 0.0
    %133 = vmatmul.mubr.f32.gmra.mxu0 %v61
    %v134 = vpop.f32.mrf.mxu0
    %v135 = vadd.f32 %v54, %v134
    %v136 = vpop.f32.mrf.mxu0
    %137 = vdwg.mxu0
    %v138 = vld [vmem:[%s5] sm:$0xff]
    %v139 = vld [vmem:[%s5 + $0x8] sm:$0xff]
    %v140 = vld [vmem:[%s5 + $0x10] sm:$0xff]
    %v141 = vld [vmem:[%s5 + $0x18] sm:$0xff]
    %v142 = vld [vmem:[%s6] sm:$0x1]
    %v144 = vlaneseq
    %v145 = vshrl.u32 %v144, 7
    %v146 = vsub.s32 0, %v145
    %v147 = vrot.slane %v142, %v146
    %v150 = vsel %vm56, %v41, 0
    %v153 = vsel %vm56, %v42, 0
    %155 = vmatprep.subr.mxu0 0.0
    %156 = vmatpush1.msra.mxu0 0.0
    %157 = vmatprep.subr.mxu0 0.0
    %158 = vmatpush1.msra.mxu0 0.0
    %159 = vmatprep.subr.mxu0 0.0
    %160 = vmatpush1.msra.mxu0 0.0
    %161 = vmatprep.subr.mxu0 0.0
    %162 = vmatpush1.msra.mxu0 0.0
    %163 = vmatprep.subr.mxu0 0.0
    %164 = vmatpush1.msra.mxu0 0.0
    %165 = vmatprep.subr.mxu0 0.0
    %166 = vmatpush1.msra.mxu0 0.0
    %167 = vmatprep.subr.mxu0 0.0
    %168 = vmatpush1.msra.mxu0 0.0
    %169 = vmatprep.subr.mxu0 0.0
    %170 = vmatpush1.msra.mxu0 0.0
    %171 = vmatprep.subr.mxu0 0.0
    %172 = vmatpush1.msra.mxu0 0.0
    %173 = vmatprep.subr.mxu0 0.0
    %174 = vmatpush1.msra.mxu0 0.0
    %175 = vmatprep.subr.mxu0 0.0
    %176 = vmatpush1.msra.mxu0 0.0
    %177 = vmatprep.subr.mxu0 0.0
    %178 = vmatpush1.msra.mxu0 0.0
    %179 = vmatprep.subr.mxu0 0.0
    %180 = vmatpush1.msra.mxu0 %v141
    %181 = vmatprep.subr.mxu0 0.0
    %182 = vmatpush1.msra.mxu0 %v140
    %183 = vmatprep.subr.mxu0 0.0
    %184 = vmatpush1.msra.mxu0 %v139
    %185 = vmatprep.subr.mxu0 0.0
    %186 = vmatpush1.msra.mxu0 %v138
    %187 = vmatprep.subr.mxu0 0.0
    %188 = vmatpush2.msra.mxu0 0.0
    %189 = vmatprep.subr.mxu0 0.0
    %190 = vmatpush2.msra.mxu0 0.0
    %191 = vmatprep.subr.mxu0 0.0
    %192 = vmatpush2.msra.mxu0 0.0
    %193 = vmatprep.subr.mxu0 0.0
    %194 = vmatpush2.msra.mxu0 0.0
    %195 = vmatprep.subr.mxu0 0.0
    %196 = vmatpush2.msra.mxu0 0.0
    %197 = vmatprep.subr.mxu0 0.0
    %198 = vmatpush2.msra.mxu0 0.0
    %199 = vmatprep.subr.mxu0 0.0
    %200 = vmatpush2.msra.mxu0 0.0
    %201 = vmatprep.subr.mxu0 0.0
    %202 = vmatpush2.msra.mxu0 0.0
    %203 = vmatprep.subr.mxu0 0.0
    %204 = vmatpush2.msra.mxu0 0.0
    %205 = vmatprep.subr.mxu0 0.0
    %206 = vmatpush2.msra.mxu0 0.0
    %207 = vmatprep.subr.mxu0 0.0
    %208 = vmatpush2.msra.mxu0 0.0
    %209 = vmatprep.subr.mxu0 0.0
    %210 = vmatpush2.msra.mxu0 0.0
    %211 = vmatprep.subr.mxu0 0.0
    %212 = vmatpush2.msra.mxu0 0.0
    %213 = vmatprep.subr.mxu0 0.0
    %214 = vmatpush2.msra.mxu0 0.0
    %215 = vmatprep.subr.mxu0 0.0
    %216 = vmatpush2.msra.mxu0 0.0
    %217 = vmatprep.subr.mxu0 0.0
    %218 = vmatpush2.msra.mxu0 0.0
    %219 = vmatprep.mubr.f32.mxu0 0.0
    %220 = vmatmul.mubr.f32.gmra.mxu0 %v150
    %v221 = vpop.f32.mrf.mxu0
    %v222 = vadd.f32 %v147, %v221
    %v223 = vpop.f32.mrf.mxu0
    %224 = vmatprep.mubr.f32.mxu0 0.0
    %225 = vmatmul.mubr.f32.gmra.mxu0 %v153
    %v226 = vpop.f32.mrf.mxu0
    %v227 = vadd.f32 %v147, %v226
    %v228 = vpop.f32.mrf.mxu0
    %229 = vdwg.mxu0
    %v230 = vld [vmem:[%s7] sm:$0xff]
    %v231 = vld [vmem:[%s7 + $0x8] sm:$0xff]
    %v232 = vld [vmem:[%s7 + $0x10] sm:$0xff]
    %v233 = vld [vmem:[%s7 + $0x18] sm:$0xff]
    %v234 = vld [vmem:[%s8] sm:$0x1]
    %v236 = vlaneseq
    %v237 = vshrl.u32 %v236, 7
    %v238 = vsub.s32 0, %v237
    %v239 = vrot.slane %v234, %v238
    %v242 = vsel %vm56, %v43, 0
    %v245 = vsel %vm56, %v44, 0
    %247 = vmatprep.subr.mxu0 0.0
    %248 = vmatpush1.msra.mxu0 0.0
    %249 = vmatprep.subr.mxu0 0.0
    %250 = vmatpush1.msra.mxu0 0.0
    %251 = vmatprep.subr.mxu0 0.0
    %252 = vmatpush1.msra.mxu0 0.0
    %253 = vmatprep.subr.mxu0 0.0
    %254 = vmatpush1.msra.mxu0 0.0
    %255 = vmatprep.subr.mxu0 0.0
    %256 = vmatpush1.msra.mxu0 0.0
    %257 = vmatprep.subr.mxu0 0.0
    %258 = vmatpush1.msra.mxu0 0.0
    %259 = vmatprep.subr.mxu0 0.0
    %260 = vmatpush1.msra.mxu0 0.0
    %261 = vmatprep.subr.mxu0 0.0
    %262 = vmatpush1.msra.mxu0 0.0
    %263 = vmatprep.subr.mxu0 0.0
    %264 = vmatpush1.msra.mxu0 0.0
    %265 = vmatprep.subr.mxu0 0.0
    %266 = vmatpush1.msra.mxu0 0.0
    %267 = vmatprep.subr.mxu0 0.0
    %268 = vmatpush1.msra.mxu0 0.0
    %269 = vmatprep.subr.mxu0 0.0
    %270 = vmatpush1.msra.mxu0 0.0
    %271 = vmatprep.subr.mxu0 0.0
    %272 = vmatpush1.msra.mxu0 %v233
    %273 = vmatprep.subr.mxu0 0.0
    %274 = vmatpush1.msra.mxu0 %v232
    %275 = vmatprep.subr.mxu0 0.0
    %276 = vmatpush1.msra.mxu0 %v231
    %277 = vmatprep.subr.mxu0 0.0
    %278 = vmatpush1.msra.mxu0 %v230
    %279 = vmatprep.subr.mxu0 0.0
    %280 = vmatpush2.msra.mxu0 0.0
    %281 = vmatprep.subr.mxu0 0.0
    %282 = vmatpush2.msra.mxu0 0.0
    %283 = vmatprep.subr.mxu0 0.0
    %284 = vmatpush2.msra.mxu0 0.0
    %285 = vmatprep.subr.mxu0 0.0
    %286 = vmatpush2.msra.mxu0 0.0
    %287 = vmatprep.subr.mxu0 0.0
    %288 = vmatpush2.msra.mxu0 0.0
    %289 = vmatprep.subr.mxu0 0.0
    %290 = vmatpush2.msra.mxu0 0.0
    %291 = vmatprep.subr.mxu0 0.0
    %292 = vmatpush2.msra.mxu0 0.0
    %293 = vmatprep.subr.mxu0 0.0
    %294 = vmatpush2.msra.mxu0 0.0
    %295 = vmatprep.subr.mxu0 0.0
    %296 = vmatpush2.msra.mxu0 0.0
    %297 = vmatprep.subr.mxu0 0.0
    %298 = vmatpush2.msra.mxu0 0.0
    %299 = vmatprep.subr.mxu0 0.0
    %300 = vmatpush2.msra.mxu0 0.0
    %301 = vmatprep.subr.mxu0 0.0
    %302 = vmatpush2.msra.mxu0 0.0
    %303 = vmatprep.subr.mxu0 0.0
    %304 = vmatpush2.msra.mxu0 0.0
    %305 = vmatprep.subr.mxu0 0.0
    %306 = vmatpush2.msra.mxu0 0.0
    %307 = vmatprep.subr.mxu0 0.0
    %308 = vmatpush2.msra.mxu0 0.0
    %309 = vmatprep.subr.mxu0 0.0
    %310 = vmatpush2.msra.mxu0 0.0
    %311 = vmatprep.mubr.f32.mxu0 0.0
    %312 = vmatmul.mubr.f32.gmra.mxu0 %v242
    %v313 = vpop.f32.mrf.mxu0
    %v314 = vadd.f32 %v239, %v313
    %v315 = vpop.f32.mrf.mxu0
    %316 = vmatprep.mubr.f32.mxu0 0.0
    %317 = vmatmul.mubr.f32.gmra.mxu0 %v245
    %v318 = vpop.f32.mrf.mxu0
    %v319 = vadd.f32 %v239, %v318
    %v320 = vpop.f32.mrf.mxu0
    %321 = vdwg.mxu0
    %vm322 = vcmask 130048
    %v324 = vsel %vm322, %v130, 0
    %v327 = vsel %vm322, %v222, 0
    %329 = vmatprep.subr.mxu0 0.0
    %330 = vmatpush1.xpose.msra.mxu0 0.0
    %331 = vmatprep.subr.mxu0 0.0
    %332 = vmatpush1.xpose.msra.mxu0 0.0
    %333 = vmatprep.subr.mxu0 0.0
    %334 = vmatpush1.xpose.msra.mxu0 0.0
    %335 = vmatprep.subr.mxu0 0.0
    %336 = vmatpush1.xpose.msra.mxu0 0.0
    %337 = vmatprep.subr.mxu0 0.0
    %338 = vmatpush1.xpose.msra.mxu0 0.0
    %339 = vmatprep.subr.mxu0 0.0
    %340 = vmatpush1.xpose.msra.mxu0 0.0
    %341 = vmatprep.subr.mxu0 0.0
    %342 = vmatpush1.xpose.msra.mxu0 0.0
    %343 = vmatprep.subr.mxu0 0.0
    %344 = vmatpush1.xpose.msra.mxu0 0.0
    %345 = vmatprep.subr.mxu0 0.0
    %346 = vmatpush1.xpose.msra.mxu0 0.0
    %347 = vmatprep.subr.mxu0 0.0
    %348 = vmatpush1.xpose.msra.mxu0 0.0
    %349 = vmatprep.subr.mxu0 0.0
    %350 = vmatpush1.xpose.msra.mxu0 0.0
    %351 = vmatprep.subr.mxu0 0.0
    %352 = vmatpush1.xpose.msra.mxu0 0.0
    %353 = vmatprep.subr.mxu0 0.0
    %354 = vmatpush1.xpose.msra.mxu0 0.0
    %355 = vmatprep.subr.mxu0 0.0
    %356 = vmatpush1.xpose.msra.mxu0 0.0
    %357 = vmatprep.subr.mxu0 0.0
    %358 = vmatpush1.xpose.msra.mxu0 0.0
    %359 = vmatprep.subr.mxu0 0.0
    %360 = vmatpush1.xpose.msra.mxu0 %v327
    %361 = vmatprep.subr.mxu0 0.0
    %362 = vmatpush2.xpose.msra.mxu0 0.0
    %363 = vmatprep.subr.mxu0 0.0
    %364 = vmatpush2.xpose.msra.mxu0 0.0
    %365 = vmatprep.subr.mxu0 0.0
    %366 = vmatpush2.xpose.msra.mxu0 0.0
    %367 = vmatprep.subr.mxu0 0.0
    %368 = vmatpush2.xpose.msra.mxu0 0.0
    %369 = vmatprep.subr.mxu0 0.0
    %370 = vmatpush2.xpose.msra.mxu0 0.0
    %371 = vmatprep.subr.mxu0 0.0
    %372 = vmatpush2.xpose.msra.mxu0 0.0
    %373 = vmatprep.subr.mxu0 0.0
    %374 = vmatpush2.xpose.msra.mxu0 0.0
    %375 = vmatprep.subr.mxu0 0.0
    %376 = vmatpush2.xpose.msra.mxu0 0.0
    %377 = vmatprep.subr.mxu0 0.0
    %378 = vmatpush2.xpose.msra.mxu0 0.0
    %379 = vmatprep.subr.mxu0 0.0
    %380 = vmatpush2.xpose.msra.mxu0 0.0
    %381 = vmatprep.subr.mxu0 0.0
    %382 = vmatpush2.xpose.msra.mxu0 0.0
    %383 = vmatprep.subr.mxu0 0.0
    %384 = vmatpush2.xpose.msra.mxu0 0.0
    %385 = vmatprep.subr.mxu0 0.0
    %386 = vmatpush2.xpose.msra.mxu0 0.0
    %387 = vmatprep.subr.mxu0 0.0
    %388 = vmatpush2.xpose.msra.mxu0 0.0
    %389 = vmatprep.subr.mxu0 0.0
    %390 = vmatpush2.xpose.msra.mxu0 0.0
    %391 = vmatprep.subr.mxu0 0.0
    %392 = vmatpush2.xpose.msra.mxu0 0.0
    %393 = vmatprep.mubr.f32.mxu0 0.0
    %394 = vmatmul.mubr.f32.gmra.mxu0 %v324
    %v395 = vpop.f32.mrf.mxu0
    %v396 = vadd.f32 0.0, %v395
    %v397 = vpop.f32.mrf.mxu0
    %398 = vdwg.mxu0
    %vm399 = vcmask 64512
    %v400 = vsel %vm399, %v396, -inf
    %401 = vmax.xlane.f32.xlu0 %v400
    %v402 = vpop.xlane.xlu0 %401
    %v403 = vsub.f32 %v396, %v402
    %v404 = vmul.f32 %v403, 1.442695
    %v405 = vpow.pop %v404
    %v406 = vsel %vm399, %v405, 0.0
    %407 = vadd.xlane.f32.xlu0 %v406
    %v408 = vpop.xlane.xlu0 %407
    %v409 = vrcp.pop %v408
    %v410 = vmul.f32 %v405, %v409
    %v412 = vsel %vm399, %v410, 0
    %414 = vmatprep.subr.mxu0 0.0
    %415 = vmatpush1.msra.mxu0 0.0
    %416 = vmatprep.subr.mxu0 0.0
    %417 = vmatpush1.msra.mxu0 0.0
    %418 = vmatprep.subr.mxu0 0.0
    %419 = vmatpush1.msra.mxu0 0.0
    %420 = vmatprep.subr.mxu0 0.0
    %421 = vmatpush1.msra.mxu0 0.0
    %422 = vmatprep.subr.mxu0 0.0
    %423 = vmatpush1.msra.mxu0 0.0
    %424 = vmatprep.subr.mxu0 0.0
    %425 = vmatpush1.msra.mxu0 0.0
    %426 = vmatprep.subr.mxu0 0.0
    %427 = vmatpush1.msra.mxu0 0.0
    %428 = vmatprep.subr.mxu0 0.0
    %429 = vmatpush1.msra.mxu0 0.0
    %430 = vmatprep.subr.mxu0 0.0
    %431 = vmatpush1.msra.mxu0 0.0
    %432 = vmatprep.subr.mxu0 0.0
    %433 = vmatpush1.msra.mxu0 0.0
    %434 = vmatprep.subr.mxu0 0.0
    %435 = vmatpush1.msra.mxu0 0.0
    %436 = vmatprep.subr.mxu0 0.0
    %437 = vmatpush1.msra.mxu0 0.0
    %438 = vmatprep.subr.mxu0 0.0
    %439 = vmatpush1.msra.mxu0 0.0
    %440 = vmatprep.subr.mxu0 0.0
    %441 = vmatpush1.msra.mxu0 0.0
    %442 = vmatprep.subr.mxu0 0.0
    %443 = vmatpush1.msra.mxu0 0.0
    %444 = vmatprep.subr.mxu0 0.0
    %445 = vmatpush1.msra.mxu0 %v314
    %446 = vmatprep.subr.mxu0 0.0
    %447 = vmatpush2.msra.mxu0 0.0
    %448 = vmatprep.subr.mxu0 0.0
    %449 = vmatpush2.msra.mxu0 0.0
    %450 = vmatprep.subr.mxu0 0.0
    %451 = vmatpush2.msra.mxu0 0.0
    %452 = vmatprep.subr.mxu0 0.0
    %453 = vmatpush2.msra.mxu0 0.0
    %454 = vmatprep.subr.mxu0 0.0
    %455 = vmatpush2.msra.mxu0 0.0
    %456 = vmatprep.subr.mxu0 0.0
    %457 = vmatpush2.msra.mxu0 0.0
    %458 = vmatprep.subr.mxu0 0.0
    %459 = vmatpush2.msra.mxu0 0.0
    %460 = vmatprep.subr.mxu0 0.0
    %461 = vmatpush2.msra.mxu0 0.0
    %462 = vmatprep.subr.mxu0 0.0
    %463 = vmatpush2.msra.mxu0 0.0
    %464 = vmatprep.subr.mxu0 0.0
    %465 = vmatpush2.msra.mxu0 0.0
    %466 = vmatprep.subr.mxu0 0.0
    %467 = vmatpush2.msra.mxu0 0.0
    %468 = vmatprep.subr.mxu0 0.0
    %469 = vmatpush2.msra.mxu0 0.0
    %470 = vmatprep.subr.mxu0 0.0
    %471 = vmatpush2.msra.mxu0 0.0
    %472 = vmatprep.subr.mxu0 0.0
    %473 = vmatpush2.msra.mxu0 0.0
    %474 = vmatprep.subr.mxu0 0.0
    %475 = vmatpush2.msra.mxu0 0.0
    %476 = vmatprep.subr.mxu0 0.0
    %477 = vmatpush2.msra.mxu0 0.0
    %478 = vmatprep.mubr.f32.mxu0 0.0
    %479 = vmatmul.mubr.f32.gmra.mxu0 %v412
    %v480 = vpop.f32.mrf.mxu0
    %v481 = vadd.f32 0.0, %v480
    %v482 = vpop.f32.mrf.mxu0
    %483 = vdwg.mxu0
    %484 = vst.msk [vmem:[#allocation2] sm:$0xff] %vm322, %v481
    %v486 = vsel %vm322, %v135, 0
    %v489 = vsel %vm322, %v227, 0
    %491 = vmatprep.subr.mxu0 0.0
    %492 = vmatpush1.xpose.msra.mxu0 0.0
    %493 = vmatprep.subr.mxu0 0.0
    %494 = vmatpush1.xpose.msra.mxu0 0.0
    %495 = vmatprep.subr.mxu0 0.0
    %496 = vmatpush1.xpose.msra.mxu0 0.0
    %497 = vmatprep.subr.mxu0 0.0
    %498 = vmatpush1.xpose.msra.mxu0 0.0
    %499 = vmatprep.subr.mxu0 0.0
    %500 = vmatpush1.xpose.msra.mxu0 0.0
    %501 = vmatprep.subr.mxu0 0.0
    %502 = vmatpush1.xpose.msra.mxu0 0.0
    %503 = vmatprep.subr.mxu0 0.0
    %504 = vmatpush1.xpose.msra.mxu0 0.0
    %505 = vmatprep.subr.mxu0 0.0
    %506 = vmatpush1.xpose.msra.mxu0 0.0
    %507 = vmatprep.subr.mxu0 0.0
    %508 = vmatpush1.xpose.msra.mxu0 0.0
    %509 = vmatprep.subr.mxu0 0.0
    %510 = vmatpush1.xpose.msra.mxu0 0.0
    %511 = vmatprep.subr.mxu0 0.0
    %512 = vmatpush1.xpose.msra.mxu0 0.0
    %513 = vmatprep.subr.mxu0 0.0
    %514 = vmatpush1.xpose.msra.mxu0 0.0
    %515 = vmatprep.subr.mxu0 0.0
    %516 = vmatpush1.xpose.msra.mxu0 0.0
    %517 = vmatprep.subr.mxu0 0.0
    %518 = vmatpush1.xpose.msra.mxu0 0.0
    %519 = vmatprep.subr.mxu0 0.0
    %520 = vmatpush1.xpose.msra.mxu0 0.0
    %521 = vmatprep.subr.mxu0 0.0
    %522 = vmatpush1.xpose.msra.mxu0 %v489
    %523 = vmatprep.subr.mxu0 0.0
    %524 = vmatpush2.xpose.msra.mxu0 0.0
    %525 = vmatprep.subr.mxu0 0.0
    %526 = vmatpush2.xpose.msra.mxu0 0.0
    %527 = vmatprep.subr.mxu0 0.0
    %528 = vmatpush2.xpose.msra.mxu0 0.0
    %529 = vmatprep.subr.mxu0 0.0
    %530 = vmatpush2.xpose.msra.mxu0 0.0
    %531 = vmatprep.subr.mxu0 0.0
    %532 = vmatpush2.xpose.msra.mxu0 0.0
    %533 = vmatprep.subr.mxu0 0.0
    %534 = vmatpush2.xpose.msra.mxu0 0.0
    %535 = vmatprep.subr.mxu0 0.0
    %536 = vmatpush2.xpose.msra.mxu0 0.0
    %537 = vmatprep.subr.mxu0 0.0
    %538 = vmatpush2.xpose.msra.mxu0 0.0
    %539 = vmatprep.subr.mxu0 0.0
    %540 = vmatpush2.xpose.msra.mxu0 0.0
    %541 = vmatprep.subr.mxu0 0.0
    %542 = vmatpush2.xpose.msra.mxu0 0.0
    %543 = vmatprep.subr.mxu0 0.0
    %544 = vmatpush2.xpose.msra.mxu0 0.0
    %545 = vmatprep.subr.mxu0 0.0
    %546 = vmatpush2.xpose.msra.mxu0 0.0
    %547 = vmatprep.subr.mxu0 0.0
    %548 = vmatpush2.xpose.msra.mxu0 0.0
    %549 = vmatprep.subr.mxu0 0.0
    %550 = vmatpush2.xpose.msra.mxu0 0.0
    %551 = vmatprep.subr.mxu0 0.0
    %552 = vmatpush2.xpose.msra.mxu0 0.0
    %553 = vmatprep.subr.mxu0 0.0
    %554 = vmatpush2.xpose.msra.mxu0 0.0
    %555 = vmatprep.mubr.f32.mxu0 0.0
    %556 = vmatmul.mubr.f32.gmra.mxu0 %v486
    %v557 = vpop.f32.mrf.mxu0
    %v558 = vadd.f32 0.0, %v557
    %v559 = vpop.f32.mrf.mxu0
    %560 = vdwg.mxu0
    %v561 = vsel %vm399, %v558, -inf
    %562 = vmax.xlane.f32.xlu0 %v561
    %v563 = vpop.xlane.xlu0 %562
    %v564 = vsub.f32 %v558, %v563
    %v565 = vmul.f32 %v564, 1.442695
    %v566 = vpow.pop %v565
    %v567 = vsel %vm399, %v566, 0.0
    %568 = vadd.xlane.f32.xlu0 %v567
    %v569 = vpop.xlane.xlu0 %568
    %v570 = vrcp.pop %v569
    %v571 = vmul.f32 %v566, %v570
    %v573 = vsel %vm399, %v571, 0
    %575 = vmatprep.subr.mxu0 0.0
    %576 = vmatpush1.msra.mxu0 0.0
    %577 = vmatprep.subr.mxu0 0.0
    %578 = vmatpush1.msra.mxu0 0.0
    %579 = vmatprep.subr.mxu0 0.0
    %580 = vmatpush1.msra.mxu0 0.0
    %581 = vmatprep.subr.mxu0 0.0
    %582 = vmatpush1.msra.mxu0 0.0
    %583 = vmatprep.subr.mxu0 0.0
    %584 = vmatpush1.msra.mxu0 0.0
    %585 = vmatprep.subr.mxu0 0.0
    %586 = vmatpush1.msra.mxu0 0.0
    %587 = vmatprep.subr.mxu0 0.0
    %588 = vmatpush1.msra.mxu0 0.0
    %589 = vmatprep.subr.mxu0 0.0
    %590 = vmatpush1.msra.mxu0 0.0
    %591 = vmatprep.subr.mxu0 0.0
    %592 = vmatpush1.msra.mxu0 0.0
    %593 = vmatprep.subr.mxu0 0.0
    %594 = vmatpush1.msra.mxu0 0.0
    %595 = vmatprep.subr.mxu0 0.0
    %596 = vmatpush1.msra.mxu0 0.0
    %597 = vmatprep.subr.mxu0 0.0
    %598 = vmatpush1.msra.mxu0 0.0
    %599 = vmatprep.subr.mxu0 0.0
    %600 = vmatpush1.msra.mxu0 0.0
    %601 = vmatprep.subr.mxu0 0.0
    %602 = vmatpush1.msra.mxu0 0.0
    %603 = vmatprep.subr.mxu0 0.0
    %604 = vmatpush1.msra.mxu0 0.0
    %605 = vmatprep.subr.mxu0 0.0
    %606 = vmatpush1.msra.mxu0 %v319
    %607 = vmatprep.subr.mxu0 0.0
    %608 = vmatpush2.msra.mxu0 0.0
    %609 = vmatprep.subr.mxu0 0.0
    %610 = vmatpush2.msra.mxu0 0.0
    %611 = vmatprep.subr.mxu0 0.0
    %612 = vmatpush2.msra.mxu0 0.0
    %613 = vmatprep.subr.mxu0 0.0
    %614 = vmatpush2.msra.mxu0 0.0
    %615 = vmatprep.subr.mxu0 0.0
    %616 = vmatpush2.msra.mxu0 0.0
    %617 = vmatprep.subr.mxu0 0.0
    %618 = vmatpush2.msra.mxu0 0.0
    %619 = vmatprep.subr.mxu0 0.0
    %620 = vmatpush2.msra.mxu0 0.0
    %621 = vmatprep.subr.mxu0 0.0
    %622 = vmatpush2.msra.mxu0 0.0
    %623 = vmatprep.subr.mxu0 0.0
    %624 = vmatpush2.msra.mxu0 0.0
    %625 = vmatprep.subr.mxu0 0.0
    %626 = vmatpush2.msra.mxu0 0.0
    %627 = vmatprep.subr.mxu0 0.0
    %628 = vmatpush2.msra.mxu0 0.0
    %629 = vmatprep.subr.mxu0 0.0
    %630 = vmatpush2.msra.mxu0 0.0
    %631 = vmatprep.subr.mxu0 0.0
    %632 = vmatpush2.msra.mxu0 0.0
    %633 = vmatprep.subr.mxu0 0.0
    %634 = vmatpush2.msra.mxu0 0.0
    %635 = vmatprep.subr.mxu0 0.0
    %636 = vmatpush2.msra.mxu0 0.0
    %637 = vmatprep.subr.mxu0 0.0
    %638 = vmatpush2.msra.mxu0 0.0
    %639 = vmatprep.mubr.f32.mxu0 0.0
    %640 = vmatmul.mubr.f32.gmra.mxu0 %v573
    %v641 = vpop.f32.mrf.mxu0
    %v642 = vadd.f32 0.0, %v641
    %v643 = vpop.f32.mrf.mxu0
    %644 = vdwg.mxu0
    %645 = vst.msk [vmem:[#allocation2 + $0x8] sm:$0xff] %vm322, %v642
    %v646 = vld [vmem:[#allocation2] sm:$0xff]
    %v647 = vld [vmem:[#allocation2 + $0x8] sm:$0xff]
    %v648 = vld [vmem:[%s9] sm:$0xff]
    %v649 = vld [vmem:[%s9 + $0x8] sm:$0xff]
    %v650 = vld [vmem:[%s10] sm:$0x1]
    %v652 = vlaneseq
    %v653 = vshrl.u32 %v652, 7
    %v654 = vsub.s32 0, %v653
    %v655 = vrot.slane %v650, %v654
    %v658 = vsel %vm322, %v646, 0
    %v661 = vsel %vm322, %v647, 0
    %663 = vmatprep.subr.mxu0 0.0
    %664 = vmatpush1.msra.mxu0 0.0
    %665 = vmatprep.subr.mxu0 0.0
    %666 = vmatpush1.msra.mxu0 0.0
    %667 = vmatprep.subr.mxu0 0.0
    %668 = vmatpush1.msra.mxu0 0.0
    %669 = vmatprep.subr.mxu0 0.0
    %670 = vmatpush1.msra.mxu0 0.0
    %671 = vmatprep.subr.mxu0 0.0
    %672 = vmatpush1.msra.mxu0 0.0
    %673 = vmatprep.subr.mxu0 0.0
    %674 = vmatpush1.msra.mxu0 0.0
    %675 = vmatprep.subr.mxu0 0.0
    %676 = vmatpush1.msra.mxu0 0.0
    %677 = vmatprep.subr.mxu0 0.0
    %678 = vmatpush1.msra.mxu0 0.0
    %679 = vmatprep.subr.mxu0 0.0
    %680 = vmatpush1.msra.mxu0 0.0
    %681 = vmatprep.subr.mxu0 0.0
    %682 = vmatpush1.msra.mxu0 0.0
    %683 = vmatprep.subr.mxu0 0.0
    %684 = vmatpush1.msra.mxu0 0.0
    %685 = vmatprep.subr.mxu0 0.0
    %686 = vmatpush1.msra.mxu0 0.0
    %687 = vmatprep.subr.mxu0 0.0
    %688 = vmatpush1.msra.mxu0 0.0
    %689 = vmatprep.subr.mxu0 0.0
    %690 = vmatpush1.msra.mxu0 0.0
    %691 = vmatprep.subr.mxu0 0.0
    %692 = vmatpush1.msra.mxu0 %v649
    %693 = vmatprep.subr.mxu0 0.0
    %694 = vmatpush1.msra.mxu0 %v648
    %695 = vmatprep.subr.mxu0 0.0
    %696 = vmatpush2.msra.mxu0 0.0
    %697 = vmatprep.subr.mxu0 0.0
    %698 = vmatpush2.msra.mxu0 0.0
    %699 = vmatprep.subr.mxu0 0.0
    %700 = vmatpush2.msra.mxu0 0.0
    %701 = vmatprep.subr.mxu0 0.0
    %702 = vmatpush2.msra.mxu0 0.0
    %703 = vmatprep.subr.mxu0 0.0
    %704 = vmatpush2.msra.mxu0 0.0
    %705 = vmatprep.subr.mxu0 0.0
    %706 = vmatpush2.msra.mxu0 0.0
    %707 = vmatprep.subr.mxu0 0.0
    %708 = vmatpush2.msra.mxu0 0.0
    %709 = vmatprep.subr.mxu0 0.0
    %710 = vmatpush2.msra.mxu0 0.0
    %711 = vmatprep.subr.mxu0 0.0
    %712 = vmatpush2.msra.mxu0 0.0
    %713 = vmatprep.subr.mxu0 0.0
    %714 = vmatpush2.msra.mxu0 0.0
    %715 = vmatprep.subr.mxu0 0.0
    %716 = vmatpush2.msra.mxu0 0.0
    %717 = vmatprep.subr.mxu0 0.0
    %718 = vmatpush2.msra.mxu0 0.0
    %719 = vmatprep.subr.mxu0 0.0
    %720 = vmatpush2.msra.mxu0 0.0
    %721 = vmatprep.subr.mxu0 0.0
    %722 = vmatpush2.msra.mxu0 0.0
    %723 = vmatprep.subr.mxu0 0.0
    %724 = vmatpush2.msra.mxu0 0.0
    %725 = vmatprep.subr.mxu0 0.0
    %726 = vmatpush2.msra.mxu0 0.0
    %727 = vmatprep.mubr.f32.mxu0 0.0
    %728 = vmatmul.mubr.f32.gmra.mxu0 %v658
    %v729 = vpop.f32.mrf.mxu0
    %v730 = vadd.f32 %v655, %v729
    %v731 = vpop.f32.mrf.mxu0
    %732 = vmatprep.mubr.f32.mxu0 0.0
    %733 = vmatmul.mubr.f32.gmra.mxu0 %v661
    %v734 = vpop.f32.mrf.mxu0
    %v735 = vadd.f32 %v655, %v734
    %v736 = vpop.f32.mrf.mxu0
    %737 = vdwg.mxu0
    %738 = vst.msk [vmem:[#allocation3] sm:$0xff] %vm56, %v730
    %739 = vst.msk [vmem:[#allocation3 + $0x8] sm:$0xff] %vm56, %v735
    // Predicated region
    $region46: #{tpu_custom_call.1} parent=1 // pred_check
      _
    $region47: #{tpu_custom_call.1} parent=1 // pred_check_branch
      %741 = sbr.rel (0) target = $region49
    $region48: #{tpu_custom_call.1} parent=1 // pred_region
      %s743 = ssub.s32 256, 256
      %744 = vsyncadd [#allocation4], %s743
      %s745 = sshll.u32 [#allocation3], 4
      %s746 = int_to_ptr.vmem [resolvable:$true] %s745
      %751 = dma.vmem_to_hbm [thread:$0]  %s746, 256, %s11, [#allocation4], 128, 128, 8
    $region49: #{tpu_custom_call.1} parent=1 // pred_fallthru
      _
    // Predicated region
    $region50: #{tpu_custom_call.1} parent=1 // pred_check
      _
    $region51: #{tpu_custom_call.1} parent=1 // pred_check_branch
      %753 = sbr.rel (0) target = $region53
    $region52: #{tpu_custom_call.1} parent=1 // pred_region
      %754 = dma.done [#allocation4], 256
    $region53: #{tpu_custom_call.1} parent=1 // pred_fallthru
      _
    %755 = vsyncpa [#allocation4], 1

</llo_original>
